<compile_context>
chip_gen: v6e
topology: v6e:2x2x1
jax: 0.10.0
libtpu: 0.0.40
codegen_flags: <defaults>
</compile_context>

<pallas_src>
import functools
import math

import jax
import jax.numpy as jnp
from jax.experimental import pallas as pl
from jax.experimental.pallas import tpu as pltpu

LANE = 128          # vreg lane width
_MIB = 1024 * 1024


def _pad_to(v: int, m: int) -> int:
    return ((v + m - 1) // m) * m


def _sublane(dtype) -> int:
    """Native sublane tile rows: 8 for 4-byte, 16 for 2-byte, 32 for 1-byte."""
    return max(8, 32 // jnp.dtype(dtype).itemsize)


def _vmem_capacity_bytes() -> int:
    try:
        return int(pltpu.get_tpu_info().vmem_capacity_bytes)
    except Exception:
        return 64 * _MIB  # conservative: v7x has the smallest VMEM (64 MiB)


def _pad2d(a, rows, cols):
    """Zero-pad a 2-D array to (rows, cols); returns `a` unchanged if aligned."""
    if a.shape == (rows, cols):
        return a
    return jnp.zeros((rows, cols), a.dtype).at[: a.shape[0], : a.shape[1]].set(a)


def _choose_row_tile(n, sub, max_tm=256, waste_frac=0.125, min_grid=2):
    """Pick a power-of-two-ish row tile (multiple of `sub`) minimizing padding
    waste, preferring >= min_grid grid steps when that costs no extra padding."""
    cands = []
    t = sub
    while t <= max(max_tm, sub):
        cands.append(t)
        t *= 2
    allowance = max(0, int(waste_frac * n))
    ok = [t for t in cands if _pad_to(n, t) - n <= allowance]
    best = max(ok) if ok else min(cands, key=lambda t: (_pad_to(n, t) - n, -t))
    # halving never increases padding; prefer enough steps for both v7x cores
    while best > sub and _pad_to(n, best) // best < min_grid:
        best //= 2
    return best


def _largest_tile(dim, target, quantum):
    """Largest multiple of `quantum` that divides `dim` and is <= target."""
    best = quantum
    t = quantum
    while t <= min(target, dim):
        if dim % t == 0:
            best = t
        t += quantum
    return best


# ----------------------------------------------------------------------------
# Fused whole-MLP kernel: one grid axis over batch-row tiles, all layers chained
# inside a single kernel body. Intermediates stay in vregs/VMEM, weights are
# VMEM-resident (single-buffered).
# ----------------------------------------------------------------------------
def _fused_mlp_kernel(*refs, num_layers: int, compute_dtype):
    # refs = (x, w0, b0, w1, b1, ..., w_{L-1}, b_{L-1}, out)
    x_ref = refs[0]
    out_ref = refs[-1]
    h = x_ref[...]  # native dtype fed to the MXU (bf16 stays bf16)
    for i in range(num_layers):
        w = refs[1 + 2 * i][...]
        b = refs[2 + 2 * i][...].astype(jnp.float32)  # [1, out_pad] broadcast
        y = jnp.dot(h, w, preferred_element_type=jnp.float32) + b
        if i < num_layers - 1:
            y = jnp.maximum(y, 0.0)
            h = y.astype(compute_dtype)  # back to native dtype for next dot
        else:
            h = y
    out_ref[...] = h.astype(out_ref.dtype)


# ----------------------------------------------------------------------------
# Fallback for large layers: K/N-tiled single Linear (+ optional ReLU).
# f32 output: accumulate directly into the (VMEM-resident) output block.
# Other dtypes: f32 accumulator in VMEM scratch.
# ----------------------------------------------------------------------------
def _linear_f32out_kernel(x_ref, w_ref, b_ref, o_ref, *, apply_relu: bool):
    k = pl.program_id(2)

    @pl.when(k == 0)
    def _():
        o_ref[...] = jnp.zeros_like(o_ref)

    o_ref[...] += jnp.dot(x_ref[...], w_ref[...], preferred_element_type=jnp.float32)

    @pl.when(k == pl.num_programs(2) - 1)
    def _():
        y = o_ref[...] + b_ref[...].astype(jnp.float32)
        if apply_relu:
            y = jnp.maximum(y, 0.0)
        o_ref[...] = y


def _linear_acc_kernel(x_ref, w_ref, b_ref, o_ref, acc_ref, *, apply_relu: bool):
    k = pl.program_id(2)

    @pl.when(k == 0)
    def _():
        acc_ref[...] = jnp.zeros_like(acc_ref)

    acc_ref[...] += jnp.dot(x_ref[...], w_ref[...], preferred_element_type=jnp.float32)

    @pl.when(k == pl.num_programs(2) - 1)
    def _():
        y = acc_ref[...] + b_ref[...].astype(jnp.float32)
        if apply_relu:
            y = jnp.maximum(y, 0.0)
        o_ref[...] = y.astype(o_ref.dtype)


def _linear_tiled_padded(xp, wp, bp, *, apply_relu, tm, tn=1024, tk=1024):
    """y = xp @ wp + bp on already-padded operands; returns the padded output.

    xp: [n_p, k_p] (n_p % tm == 0), wp: [k_p, m_p], bp: [1, m_p]; k_p/m_p are
    multiples of 128. Keeping everything padded lets multi-layer callers chain
    layers without per-layer slice/re-pad HBM round-trips.
    """
    n_p, k_p = xp.shape
    k_p2, m_p = wp.shape
    assert k_p == k_p2 and n_p % tm == 0

    tk = _largest_tile(k_p, tk, LANE)
    tn = _largest_tile(m_p, tn, LANE)

    out_dtype = xp.dtype
    direct = jnp.dtype(out_dtype) == jnp.dtype(jnp.float32)
    kernel = functools.partial(
        _linear_f32out_kernel if direct else _linear_acc_kernel, apply_relu=apply_relu
    )

    itemsize = jnp.dtype(xp.dtype).itemsize
    ws = 2 * (tm * tk + tk * tn + tn) * itemsize          # double-buffered inputs
    ws += 2 * tm * tn * jnp.dtype(out_dtype).itemsize     # output block
    if not direct:
        ws += 4 * tm * tn                                 # f32 scratch accumulator
    cap = _vmem_capacity_bytes()
    vmem_limit = int(min(cap, max(2 * ws, 32 * _MIB)))

    return pl.pallas_call(
        kernel,
        out_shape=jax.ShapeDtypeStruct((n_p, m_p), out_dtype),
        grid=(n_p // tm, m_p // tn, k_p // tk),
        in_specs=[
            pl.BlockSpec((tm, tk), lambda i, j, k: (i, k)),
            pl.BlockSpec((tk, tn), lambda i, j, k: (k, j)),
            pl.BlockSpec((1, tn), lambda i, j, k: (0, j)),
        ],
        out_specs=pl.BlockSpec((tm, tn), lambda i, j, k: (i, j)),
        scratch_shapes=[] if direct else [pltpu.VMEM((tm, tn), jnp.float32)],
        compiler_params=pltpu.CompilerParams(
            dimension_semantics=("parallel", "parallel", "arbitrary"),
            vmem_limit_bytes=vmem_limit,
        ),
        cost_estimate=pl.CostEstimate(
            flops=2 * n_p * k_p * m_p,
            transcendentals=0,
            bytes_accessed=int((n_p * k_p + k_p * m_p + m_p + n_p * m_p) * itemsize),
        ),
    )(xp, wp, bp)


def linear_pallas(x, w, b, *, apply_relu: bool = False, tm=None, tn=1024, tk=1024):
    """Standalone y = x @ w + b (optionally ReLU); pads/slices for the caller."""
    n, in_dim = x.shape
    in_dim_w, out_dim = w.shape
    assert in_dim == in_dim_w
    sub = _sublane(x.dtype)
    if tm is None:
        tm = _choose_row_tile(n, sub, max_tm=512)
    n_p = _pad_to(n, tm)
    k_p = _pad_to(in_dim, LANE)
    m_p = _pad_to(out_dim, LANE)
    xp = _pad2d(x, n_p, k_p)
    wp = _pad2d(w, k_p, m_p)
    bp = _pad2d(b.reshape(1, -1), 1, m_p)
    out = _linear_tiled_padded(xp, wp, bp, apply_relu=apply_relu, tm=tm, tn=tn, tk=tk)
    return out[:n, :out_dim]


# ----------------------------------------------------------------------------
# Parameter init matching the PyTorch module (kaiming_normal_ weights, zero bias)
# ----------------------------------------------------------------------------
def init_mlp_params(key, num_layers, hidden_dim, in_dims, out_dims, dtype=jnp.float32):
    """Weights stored transposed relative to nn.Linear: shape [in_dim, out_dim]."""
    params = []
    curr_in = in_dims
    for i in range(num_layers):
        out_dim = out_dims if i == num_layers - 1 else hidden_dim
        key, wkey = jax.random.split(key)
        std = math.sqrt(2.0 / curr_in)  # kaiming_normal_, fan_in, gain sqrt(2)
        w = (std * jax.random.normal(wkey, (curr_in, out_dim), dtype=jnp.float32)).astype(dtype)
        b = jnp.zeros((out_dim,), dtype=dtype)
        params.append((w, b))
        curr_in = out_dim
    return params


# ----------------------------------------------------------------------------
# Forward pass matching MLP.forward: Linear -> ReLU for all but the last layer.
# ----------------------------------------------------------------------------
def mlp_forward(x, params, *, tm=None, fuse_vmem_budget_bytes=None):
    n, in_dim = x.shape
    num_layers = len(params)
    out_dim = params[-1][0].shape[1]
    x_dtype = x.dtype
    sub = _sublane(x_dtype)

    # Lane-padded feature dims per layer boundary.
    dims = [in_dim] + [w.shape[1] for w, _ in params]
    dims_pad = [_pad_to(d, LANE) for d in dims]

    if tm is None:
        tm = _choose_row_tile(n, sub, max_tm=256, min_grid=2)
    n_pad = _pad_to(n, tm)

    cap = _vmem_capacity_bytes()
    if fuse_vmem_budget_bytes is None:
        # Generation-aware: ~40 MiB on v7x (64 MiB VMEM), ~80 MiB on v5e/v6e.
        fuse_vmem_budget_bytes = int(cap * 0.625)

    x_itemsize = jnp.dtype(x_dtype).itemsize
    w_itemsize = jnp.dtype(params[0][0].dtype).itemsize
    # Weights/biases are single-buffered (constant index map) -> counted once.
    w_bytes = (
        sum(dims_pad[i] * dims_pad[i + 1] + dims_pad[i + 1] for i in range(num_layers))
        * w_itemsize
    )
    io_bytes = 2 * (tm * dims_pad[0] + tm * dims_pad[-1]) * x_itemsize  # x/out, dbl-buf
    act_bytes = 2 * tm * max(dims_pad) * 4  # live f32 h + MXU output staging
    fused_bytes = w_bytes + io_bytes + act_bytes

    if fused_bytes > fuse_vmem_budget_bytes:
        # Per-layer K/N-tiled kernels; activations stay padded between layers.
        # TODO(synk): for models just over the budget (esp. v7x's 64 MiB VMEM),
        # keep one kernel and stream oversized weights with pltpu.emit_pipeline
        # from pl.ANY HBM refs instead of bouncing intermediates through HBM.
        tm_fb = _choose_row_tile(n, sub, max_tm=512, min_grid=2)
        n_pad_fb = _pad_to(n, tm_fb)
        h = _pad2d(x, n_pad_fb, dims_pad[0])
        for i, (w, b) in enumerate(params):
            wp = _pad2d(w, dims_pad[i], dims_pad[i + 1])
            bp = _pad2d(b.reshape(1, -1), 1, dims_pad[i + 1])
            h = _linear_tiled_padded(
                h, wp, bp, apply_relu=(i < num_layers - 1), tm=tm_fb
            )
        return h[:n, :out_dim]

    # ---- fused path: one pallas_call for the whole MLP ----
    xp = _pad2d(x, n_pad, dims_pad[0])
    flat_inputs = [xp]
    for li, (w, b) in enumerate(params):
        flat_inputs.append(_pad2d(w, dims_pad[li], dims_pad[li + 1]))
        flat_inputs.append(_pad2d(b.reshape(1, -1), 1, dims_pad[li + 1]))

    flops = sum(2 * n_pad * dims_pad[i] * dims_pad[i + 1] for i in range(num_layers))
    bytes_accessed = int(
        sum(int(a.size) * jnp.dtype(a.dtype).itemsize for a in flat_inputs)
        + n_pad * dims_pad[-1] * x_itemsize
    )
    vmem_limit = int(min(cap, max(int(fused_bytes * 1.25) + 4 * _MIB, 32 * _MIB)))
    kernel = functools.partial(
        _fused_mlp_kernel, num_layers=num_layers, compute_dtype=x_dtype
    )

    def run(single_buffer_weights):
        in_specs = [pl.BlockSpec((tm, dims_pad[0]), lambda i: (i, 0))]
        wb_kwargs = (
            {"pipeline_mode": pl.Buffered(1)} if single_buffer_weights else {}
        )
        for li in range(num_layers):
            in_specs.append(
                pl.BlockSpec(
                    (dims_pad[li], dims_pad[li + 1]), lambda i: (0, 0), **wb_kwargs
                )
            )
            in_specs.append(
                pl.BlockSpec((1, dims_pad[li + 1]), lambda i: (0, 0), **wb_kwargs)
            )
        return pl.pallas_call(
            kernel,
            out_shape=jax.ShapeDtypeStruct((n_pad, dims_pad[-1]), x_dtype),
            grid=(n_pad // tm,),
            in_specs=in_specs,
            out_specs=pl.BlockSpec((tm, dims_pad[-1]), lambda i: (i, 0)),
            compiler_params=pltpu.CompilerParams(
                dimension_semantics=("parallel",),
                vmem_limit_bytes=vmem_limit,
            ),
            cost_estimate=pl.CostEstimate(
                flops=flops, transcendentals=0, bytes_accessed=bytes_accessed
            ),
        )(*flat_inputs)

    try:
        out = run(single_buffer_weights=True)
    except Exception:
        # pipeline_mode=pl.Buffered(1) unsupported on this jax/libtpu combo:
        # retry with default (double-buffered) weight specs.
        out = run(single_buffer_weights=False)
    return out[:n, :out_dim]


# ----------------------------------------------------------------------------
# Reference mirroring the module (and the kernel's numerics: f32 accumulation,
# intermediates cast back to the input dtype).
# ----------------------------------------------------------------------------
def _mlp_reference(x, params):
    h = x
    for i, (w, b) in enumerate(params):
        y = (
            jnp.dot(
                h.astype(jnp.float32),
                w.astype(jnp.float32),
                precision=jax.lax.Precision.HIGHEST,
            )
            + b.astype(jnp.float32)
        )
        if i < len(params) - 1:
            y = jnp.maximum(y, 0.0)
            h = y.astype(x.dtype)
        else:
            h = y
    return h.astype(x.dtype)


if __name__ == "__main__":
    # Shapes consistent with the module: MLP(num_layers=3, hidden_dim=32,
    # in_dims=32, out_dims=16) applied to a [batch=8, in_dims=32] input.
    num_layers, hidden_dim, in_dims, out_dims = 3, 32, 32, 16
    batch = 8

    key = jax.random.PRNGKey(0)
    key, xkey = jax.random.split(key)
    x = jax.random.normal(xkey, (batch, in_dims), dtype=jnp.float32)
    params = init_mlp_params(key, num_layers, hidden_dim, in_dims, out_dims)
    ref = _mlp_reference(x, params)

    # 1) Fused single-kernel path (f32).
    out = jax.block_until_ready(mlp_forward(x, params))
    assert out.shape == (batch, out_dims)
    assert jnp.allclose(out, ref, atol=1e-4, rtol=1e-4)

    # 2) Ragged batch (exercises batch/feature padding).
    out_r = jax.block_until_ready(mlp_forward(x[:5], params))
    ref_r = _mlp_reference(x[:5], params)
    assert out_r.shape == (5, out_dims)
    assert jnp.allclose(out_r, ref_r, atol=1e-4, rtol=1e-4)

    # 3) Force the large-model fallback (per-layer K/N-tiled kernels, padded
    #    activations chained without per-layer slicing).
    out_fb = jax.block_until_ready(mlp_forward(x, params, fuse_vmem_budget_bytes=0))
    assert jnp.allclose(out_fb, ref, atol=1e-4, rtol=1e-4)

    # 4) bf16 path: native-dtype MXU inputs, f32 accumulation, 16-row sublanes.
    xb = x.astype(jnp.bfloat16)
    params_b = [(w.astype(jnp.bfloat16), b.astype(jnp.bfloat16)) for w, b in params]
    out_b = jax.block_until_ready(mlp_forward(xb, params_b))
    ref_b = _mlp_reference(xb, params_b)
    assert out_b.shape == (batch, out_dims)
    assert jnp.allclose(
        out_b.astype(jnp.float32), ref_b.astype(jnp.float32), atol=5e-2, rtol=5e-2
    )

    # 5) Direct tiled-linear check with non-aligned dims.
    key, k1, k2 = jax.random.split(key, 3)
    xt = jax.random.normal(k1, (16, 200), dtype=jnp.float32)
    wt = jax.random.normal(k2, (200, 72), dtype=jnp.float32) * 0.1
    bt = jnp.ones((72,), dtype=jnp.float32)
    yt = jax.block_until_ready(linear_pallas(xt, wt, bt, apply_relu=True))
    yt_ref = jnp.maximum(
        jnp.dot(xt, wt, precision=jax.lax.Precision.HIGHEST) + bt, 0.0
    )
    assert jnp.allclose(yt, yt_ref, atol=1e-4, rtol=1e-4)

    print("KERNEL_OK")
</pallas_src>

<mosaic_0001>
module attributes {stable_mosaic.version = 11 : i64} {
  func.func @_fused_mlp_kernel(%arg0: i32, %arg1: memref<8x128xf32, #tpu.memory_space<vmem>>, %arg2: memref<128x128xf32, #tpu.memory_space<vmem>>, %arg3: memref<1x128xf32, #tpu.memory_space<vmem>>, %arg4: memref<128x128xf32, #tpu.memory_space<vmem>>, %arg5: memref<1x128xf32, #tpu.memory_space<vmem>>, %arg6: memref<128x128xf32, #tpu.memory_space<vmem>>, %arg7: memref<1x128xf32, #tpu.memory_space<vmem>>, %arg8: memref<8x128xf32, #tpu.memory_space<vmem>>) attributes {dimension_semantics = [#tpu.dimension_semantics<parallel>], iteration_bounds = array<i64: 1>, scalar_prefetch = 0 : i64, scratch_operands = 0 : i64, tpu.core_type = #tpu.core_type<tc>, window_params = [{transform_indices = @transform_0, window_bounds = array<i64: 8, 128>}, {pipeline_mode = #tpu.pipeline_mode<synchronous>, transform_indices = @transform_1, window_bounds = array<i64: 128, 128>}, {pipeline_mode = #tpu.pipeline_mode<synchronous>, transform_indices = @transform_2, window_bounds = array<i64: 1, 128>}, {pipeline_mode = #tpu.pipeline_mode<synchronous>, transform_indices = @transform_3, window_bounds = array<i64: 128, 128>}, {pipeline_mode = #tpu.pipeline_mode<synchronous>, transform_indices = @transform_4, window_bounds = array<i64: 1, 128>}, {pipeline_mode = #tpu.pipeline_mode<synchronous>, transform_indices = @transform_5, window_bounds = array<i64: 128, 128>}, {pipeline_mode = #tpu.pipeline_mode<synchronous>, transform_indices = @transform_6, window_bounds = array<i64: 1, 128>}, {transform_indices = @transform_7, window_bounds = array<i64: 8, 128>}]} {
    %c0 = arith.constant 0 : index
    %c0_0 = arith.constant 0 : index
    %0 = vector.load %arg1[%c0, %c0_0] : memref<8x128xf32, #tpu.memory_space<vmem>>, vector<8x128xf32>
    %c0_1 = arith.constant 0 : index
    %c0_2 = arith.constant 0 : index
    %1 = vector.load %arg2[%c0_1, %c0_2] : memref<128x128xf32, #tpu.memory_space<vmem>>, vector<128x128xf32>
    %c0_3 = arith.constant 0 : index
    %c0_4 = arith.constant 0 : index
    %2 = vector.load %arg3[%c0_3, %c0_4] : memref<1x128xf32, #tpu.memory_space<vmem>>, vector<1x128xf32>
    %cst = arith.constant dense<0.000000e+00> : vector<8x128xf32>
    %3 = tpu.matmul %0, %1, %cst {dimension_numbers = #tpu.dot_dimension_numbers<[1], [0], [0], [1], [0, 0, 1, 1], [], []>} : vector<8x128xf32>, vector<128x128xf32>, vector<8x128xf32> -> vector<8x128xf32>
    %4 = vector.broadcast %2 : vector<1x128xf32> to vector<8x128xf32>
    %5 = arith.addf %3, %4 : vector<8x128xf32>
    %cst_5 = arith.constant 0.000000e+00 : f32
    %6 = vector.broadcast %cst_5 : f32 to vector<8x128xf32>
    %7 = arith.maximumf %5, %6 : vector<8x128xf32>
    %c0_6 = arith.constant 0 : index
    %c0_7 = arith.constant 0 : index
    %8 = vector.load %arg4[%c0_6, %c0_7] : memref<128x128xf32, #tpu.memory_space<vmem>>, vector<128x128xf32>
    %c0_8 = arith.constant 0 : index
    %c0_9 = arith.constant 0 : index
    %9 = vector.load %arg5[%c0_8, %c0_9] : memref<1x128xf32, #tpu.memory_space<vmem>>, vector<1x128xf32>
    %cst_10 = arith.constant dense<0.000000e+00> : vector<8x128xf32>
    %10 = tpu.matmul %7, %8, %cst_10 {dimension_numbers = #tpu.dot_dimension_numbers<[1], [0], [0], [1], [0, 0, 1, 1], [], []>} : vector<8x128xf32>, vector<128x128xf32>, vector<8x128xf32> -> vector<8x128xf32>
    %11 = vector.broadcast %9 : vector<1x128xf32> to vector<8x128xf32>
    %12 = arith.addf %10, %11 : vector<8x128xf32>
    %cst_11 = arith.constant 0.000000e+00 : f32
    %13 = vector.broadcast %cst_11 : f32 to vector<8x128xf32>
    %14 = arith.maximumf %12, %13 : vector<8x128xf32>
    %c0_12 = arith.constant 0 : index
    %c0_13 = arith.constant 0 : index
    %15 = vector.load %arg6[%c0_12, %c0_13] : memref<128x128xf32, #tpu.memory_space<vmem>>, vector<128x128xf32>
    %c0_14 = arith.constant 0 : index
    %c0_15 = arith.constant 0 : index
    %16 = vector.load %arg7[%c0_14, %c0_15] : memref<1x128xf32, #tpu.memory_space<vmem>>, vector<1x128xf32>
    %cst_16 = arith.constant dense<0.000000e+00> : vector<8x128xf32>
    %17 = tpu.matmul %14, %15, %cst_16 {dimension_numbers = #tpu.dot_dimension_numbers<[1], [0], [0], [1], [0, 0, 1, 1], [], []>} : vector<8x128xf32>, vector<128x128xf32>, vector<8x128xf32> -> vector<8x128xf32>
    %18 = vector.broadcast %16 : vector<1x128xf32> to vector<8x128xf32>
    %19 = arith.addf %17, %18 : vector<8x128xf32>
    %c0_17 = arith.constant 0 : index
    %c0_18 = arith.constant 0 : index
    %20 = vector.load %arg8[%c0_17, %c0_18] : memref<8x128xf32, #tpu.memory_space<vmem>>, vector<8x128xf32>
    tpu.vector_store %arg8[%c0_17, %c0_18], %19 {strides = array<i32>} : memref<8x128xf32, #tpu.memory_space<vmem>>, vector<8x128xf32>,
    return
  }
  func.func @transform_0(%arg0: i32) -> (i32, i32) {
    %c0_i32 = arith.constant 0 : i32
    %c0_i32_0 = arith.constant 0 : i32
    return %arg0, %c0_i32 : i32, i32
  }
  func.func @transform_1(%arg0: i32) -> (i32, i32) {
    %c0_i32 = arith.constant 0 : i32
    %c0_i32_0 = arith.constant 0 : i32
    %c0_i32_1 = arith.constant 0 : i32
    return %c0_i32, %c0_i32_0 : i32, i32
  }
  func.func @transform_2(%arg0: i32) -> (i32, i32) {
    %c0_i32 = arith.constant 0 : i32
    %c0_i32_0 = arith.constant 0 : i32
    %c0_i32_1 = arith.constant 0 : i32
    return %c0_i32, %c0_i32_0 : i32, i32
  }
  func.func @transform_3(%arg0: i32) -> (i32, i32) {
    %c0_i32 = arith.constant 0 : i32
    %c0_i32_0 = arith.constant 0 : i32
    %c0_i32_1 = arith.constant 0 : i32
    return %c0_i32, %c0_i32_0 : i32, i32
  }
  func.func @transform_4(%arg0: i32) -> (i32, i32) {
    %c0_i32 = arith.constant 0 : i32
    %c0_i32_0 = arith.constant 0 : i32
    %c0_i32_1 = arith.constant 0 : i32
    return %c0_i32, %c0_i32_0 : i32, i32
  }
  func.func @transform_5(%arg0: i32) -> (i32, i32) {
    %c0_i32 = arith.constant 0 : i32
    %c0_i32_0 = arith.constant 0 : i32
    %c0_i32_1 = arith.constant 0 : i32
    return %c0_i32, %c0_i32_0 : i32, i32
  }
  func.func @transform_6(%arg0: i32) -> (i32, i32) {
    %c0_i32 = arith.constant 0 : i32
    %c0_i32_0 = arith.constant 0 : i32
    %c0_i32_1 = arith.constant 0 : i32
    return %c0_i32, %c0_i32_0 : i32, i32
  }
  func.func @transform_7(%arg0: i32) -> (i32, i32) {
    %c0_i32 = arith.constant 0 : i32
    %c0_i32_0 = arith.constant 0 : i32
    return %arg0, %c0_i32 : i32, i32
  }
}

module attributes {stable_mosaic.version = 11 : i64} {
  func.func @_fused_mlp_kernel(%arg0: i32, %arg1: memref<8x128xf32, #tpu.memory_space<vmem>>, %arg2: memref<128x128xf32, #tpu.memory_space<vmem>>, %arg3: memref<1x128xf32, #tpu.memory_space<vmem>>, %arg4: memref<128x128xf32, #tpu.memory_space<vmem>>, %arg5: memref<1x128xf32, #tpu.memory_space<vmem>>, %arg6: memref<128x128xf32, #tpu.memory_space<vmem>>, %arg7: memref<1x128xf32, #tpu.memory_space<vmem>>, %arg8: memref<8x128xf32, #tpu.memory_space<vmem>>) attributes {dimension_semantics = [#tpu.dimension_semantics<parallel>], iteration_bounds = array<i64: 1>, scalar_prefetch = 0 : i64, scratch_operands = 0 : i64, tpu.core_type = #tpu.core_type<tc>, window_params = [{transform_indices = @transform_0, window_bounds = array<i64: 8, 128>}, {pipeline_mode = #tpu.pipeline_mode<synchronous>, transform_indices = @transform_1, window_bounds = array<i64: 128, 128>}, {pipeline_mode = #tpu.pipeline_mode<synchronous>, transform_indices = @transform_2, window_bounds = array<i64: 1, 128>}, {pipeline_mode = #tpu.pipeline_mode<synchronous>, transform_indices = @transform_3, window_bounds = array<i64: 128, 128>}, {pipeline_mode = #tpu.pipeline_mode<synchronous>, transform_indices = @transform_4, window_bounds = array<i64: 1, 128>}, {pipeline_mode = #tpu.pipeline_mode<synchronous>, transform_indices = @transform_5, window_bounds = array<i64: 128, 128>}, {pipeline_mode = #tpu.pipeline_mode<synchronous>, transform_indices = @transform_6, window_bounds = array<i64: 1, 128>}, {transform_indices = @transform_7, window_bounds = array<i64: 8, 128>}]} {
    %c0 = arith.constant 0 : index
    %c0_0 = arith.constant 0 : index
    %0 = vector.load %arg1[%c0, %c0_0] : memref<8x128xf32, #tpu.memory_space<vmem>>, vector<8x128xf32>
    %c0_1 = arith.constant 0 : index
    %c0_2 = arith.constant 0 : index
    %1 = vector.load %arg2[%c0_1, %c0_2] : memref<128x128xf32, #tpu.memory_space<vmem>>, vector<128x128xf32>
    %c0_3 = arith.constant 0 : index
    %c0_4 = arith.constant 0 : index
    %2 = vector.load %arg3[%c0_3, %c0_4] : memref<1x128xf32, #tpu.memory_space<vmem>>, vector<1x128xf32>
    %cst = arith.constant dense<0.000000e+00> : vector<8x128xf32>
    %3 = tpu.matmul %0, %1, %cst {dimension_numbers = #tpu.dot_dimension_numbers<[1], [0], [0], [1], [0, 0, 1, 1], [], []>} : vector<8x128xf32>, vector<128x128xf32>, vector<8x128xf32> -> vector<8x128xf32>
    %4 = vector.broadcast %2 : vector<1x128xf32> to vector<8x128xf32>
    %5 = arith.addf %3, %4 : vector<8x128xf32>
    %cst_5 = arith.constant 0.000000e+00 : f32
    %6 = vector.broadcast %cst_5 : f32 to vector<8x128xf32>
    %7 = arith.maximumf %5, %6 : vector<8x128xf32>
    %c0_6 = arith.constant 0 : index
    %c0_7 = arith.constant 0 : index
    %8 = vector.load %arg4[%c0_6, %c0_7] : memref<128x128xf32, #tpu.memory_space<vmem>>, vector<128x128xf32>
    %c0_8 = arith.constant 0 : index
    %c0_9 = arith.constant 0 : index
    %9 = vector.load %arg5[%c0_8, %c0_9] : memref<1x128xf32, #tpu.memory_space<vmem>>, vector<1x128xf32>
    %cst_10 = arith.constant dense<0.000000e+00> : vector<8x128xf32>
    %10 = tpu.matmul %7, %8, %cst_10 {dimension_numbers = #tpu.dot_dimension_numbers<[1], [0], [0], [1], [0, 0, 1, 1], [], []>} : vector<8x128xf32>, vector<128x128xf32>, vector<8x128xf32> -> vector<8x128xf32>
    %11 = vector.broadcast %9 : vector<1x128xf32> to vector<8x128xf32>
    %12 = arith.addf %10, %11 : vector<8x128xf32>
    %cst_11 = arith.constant 0.000000e+00 : f32
    %13 = vector.broadcast %cst_11 : f32 to vector<8x128xf32>
    %14 = arith.maximumf %12, %13 : vector<8x128xf32>
    %c0_12 = arith.constant 0 : index
    %c0_13 = arith.constant 0 : index
    %15 = vector.load %arg6[%c0_12, %c0_13] : memref<128x128xf32, #tpu.memory_space<vmem>>, vector<128x128xf32>
    %c0_14 = arith.constant 0 : index
    %c0_15 = arith.constant 0 : index
    %16 = vector.load %arg7[%c0_14, %c0_15] : memref<1x128xf32, #tpu.memory_space<vmem>>, vector<1x128xf32>
    %cst_16 = arith.constant dense<0.000000e+00> : vector<8x128xf32>
    %17 = tpu.matmul %14, %15, %cst_16 {dimension_numbers = #tpu.dot_dimension_numbers<[1], [0], [0], [1], [0, 0, 1, 1], [], []>} : vector<8x128xf32>, vector<128x128xf32>, vector<8x128xf32> -> vector<8x128xf32>
    %18 = vector.broadcast %16 : vector<1x128xf32> to vector<8x128xf32>
    %19 = arith.addf %17, %18 : vector<8x128xf32>
    %c0_17 = arith.constant 0 : index
    %c0_18 = arith.constant 0 : index
    %20 = vector.load %arg8[%c0_17, %c0_18] : memref<8x128xf32, #tpu.memory_space<vmem>>, vector<8x128xf32>
    tpu.vector_store %arg8[%c0_17, %c0_18], %19 {strides = array<i32>} : memref<8x128xf32, #tpu.memory_space<vmem>>, vector<8x128xf32>,
    return
  }
  func.func @transform_0(%arg0: i32) -> (i32, i32) {
    %c0_i32 = arith.constant 0 : i32
    %c0_i32_0 = arith.constant 0 : i32
    return %arg0, %c0_i32 : i32, i32
  }
  func.func @transform_1(%arg0: i32) -> (i32, i32) {
    %c0_i32 = arith.constant 0 : i32
    %c0_i32_0 = arith.constant 0 : i32
    %c0_i32_1 = arith.constant 0 : i32
    return %c0_i32, %c0_i32_0 : i32, i32
  }
  func.func @transform_2(%arg0: i32) -> (i32, i32) {
    %c0_i32 = arith.constant 0 : i32
    %c0_i32_0 = arith.constant 0 : i32
    %c0_i32_1 = arith.constant 0 : i32
    return %c0_i32, %c0_i32_0 : i32, i32
  }
  func.func @transform_3(%arg0: i32) -> (i32, i32) {
    %c0_i32 = arith.constant 0 : i32
    %c0_i32_0 = arith.constant 0 : i32
    %c0_i32_1 = arith.constant 0 : i32
    return %c0_i32, %c0_i32_0 : i32, i32
  }
  func.func @transform_4(%arg0: i32) -> (i32, i32) {
    %c0_i32 = arith.constant 0 : i32
    %c0_i32_0 = arith.constant 0 : i32
    %c0_i32_1 = arith.constant 0 : i32
    return %c0_i32, %c0_i32_0 : i32, i32
  }
  func.func @transform_5(%arg0: i32) -> (i32, i32) {
    %c0_i32 = arith.constant 0 : i32
    %c0_i32_0 = arith.constant 0 : i32
    %c0_i32_1 = arith.constant 0 : i32
    return %c0_i32, %c0_i32_0 : i32, i32
  }
  func.func @transform_6(%arg0: i32) -> (i32, i32) {
    %c0_i32 = arith.constant 0 : i32
    %c0_i32_0 = arith.constant 0 : i32
    %c0_i32_1 = arith.constant 0 : i32
    return %c0_i32, %c0_i32_0 : i32, i32
  }
  func.func @transform_7(%arg0: i32) -> (i32, i32) {
    %c0_i32 = arith.constant 0 : i32
    %c0_i32_0 = arith.constant 0 : i32
    return %arg0, %c0_i32 : i32, i32
  }
}

</mosaic_0001>

<llo_original>
// kernel: tpu_custom_call.1
$region0: #{tpu_custom_call.1}
  #allocation0 [shape = 'u32[]', space=smem, size = 0x4, offset = 0x4, fixed_abs, tag = 'smem constant byte address 0x4 - core index']
  #allocation1 [shape = 'u32[144,128]{1,0:T(1,128)}', space=vmem, size = 0x12000, scoped, tag = 'internal scratch']
  %s0 = inlined_call_operand.hbm [shape: f32[8,128], index: 0, kind: input, shape index: {}]
  %s1 = inlined_call_operand.hbm [shape: f32[128,128], index: 1, kind: input, shape index: {}]
  %s2 = inlined_call_operand.vmem [shape: f32[1,128], index: 2, kind: input, shape index: {}]
  %s3 = inlined_call_operand.hbm [shape: f32[128,128], index: 3, kind: input, shape index: {}]
  %s4 = inlined_call_operand.vmem [shape: f32[1,128], index: 4, kind: input, shape index: {}]
  %s5 = inlined_call_operand.hbm [shape: f32[128,128], index: 5, kind: input, shape index: {}]
  %s6 = inlined_call_operand.vmem [shape: f32[1,128], index: 6, kind: input, shape index: {}]
  %s7 = inlined_call_operand.hbm [shape: f32[8,128], index: 7, kind: output, shape index: {}]
  %s8 = sld [smem:[#allocation0]]
  $region54: #{tpu_custom_call.1} parent=0
    _
  %s10 = ssub.s32 1, %s8
  %s11 = scalar_select 0, %s10, %s8
  $region1: #{tpu_custom_call.1} parent=0
    #allocation2 [shape = 'u8[4096]{0}', space=vmem, size = 0x1000, scoped, tag = 'input window, operand 0, single buffered']
    #allocation3 [shape = 's32[1]{0}', space=sflag, size = 0x4, scoped, tag = 'scoped memory for tpu_custom_call.1']
    #allocation4 [shape = 's32[1]{0}', space=sflag, size = 0x4, scoped, tag = 'scoped memory for tpu_custom_call.1']
    #allocation5 [shape = 'u8[65536]{0}', space=vmem, size = 0x10000, scoped, tag = 'input window, operand 1, single buffered']
    #allocation6 [shape = 's32[1]{0}', space=sflag, size = 0x4, scoped, tag = 'scoped memory for tpu_custom_call.1']
    #allocation7 [shape = 'u8[65536]{0}', space=vmem, size = 0x10000, scoped, tag = 'input window, operand 3, single buffered']
    #allocation8 [shape = 'u8[65536]{0}', space=vmem, size = 0x10000, scoped, tag = 'input window, operand 5, single buffered']
    #allocation9 [shape = 's32[1]{0}', space=sflag, size = 0x4, scoped, tag = 'scoped memory for tpu_custom_call.1']
    #allocation10 [shape = 'u8[4096]{0}', space=vmem, size = 0x1000, scoped, tag = 'output window, operand 0, single buffered']
    %12 = vsyncpa [#allocation3], 0
    %13 = vsyncpa [#allocation6], 0
    %14 = vsyncpa [#allocation9], 0
    %15 = vsyncpa [#allocation4], 0
    // Predicated region
    $region2: #{tpu_custom_call.1} parent=1 // pred_check
      _
    $region3: #{tpu_custom_call.1} parent=1 // pred_check_branch
      %17 = sbr.rel (0) target = $region5
    $region4: #{tpu_custom_call.1} parent=1 // pred_region
      %s19 = ssub.s32 128, 128
      %20 = vsyncadd [#allocation3], %s19
      %s22 = sshll.u32 [#allocation2], 4
      %s23 = int_to_ptr.vmem [resolvable:$true] %s22
      %25 = dma.hbm_to_vmem [thread:$0]  %s0, 128, %s23, [#allocation3]
    $region5: #{tpu_custom_call.1} parent=1 // pred_fallthru
      _
    // Predicated region
    $region6: #{tpu_custom_call.1} parent=1 // pred_check
      _
    $region7: #{tpu_custom_call.1} parent=1 // pred_check_branch
      %27 = sbr.rel (0) target = $region9
    $region8: #{tpu_custom_call.1} parent=1 // pred_region
      %s29 = ssub.s32 2048, 2048
      %30 = vsyncadd [#allocation6], %s29
      %s31 = sshll.u32 [#allocation5], 4
      %s32 = int_to_ptr.vmem [resolvable:$true] %s31
      %37 = dma.hbm_to_vmem [thread:$0]  %s1, 2048, %s32, [#allocation6], 128, 128, 8
    $region9: #{tpu_custom_call.1} parent=1 // pred_fallthru
      _
    // Predicated region
    $region10: #{tpu_custom_call.1} parent=1 // pred_check
      _
    $region11: #{tpu_custom_call.1} parent=1 // pred_check_branch
      %39 = sbr.rel (0) target = $region13
    $region12: #{tpu_custom_call.1} parent=1 // pred_region
      _
    $region13: #{tpu_custom_call.1} parent=1 // pred_fallthru
      _
    // Predicated region
    $region14: #{tpu_custom_call.1} parent=1 // pred_check
      _
    $region15: #{tpu_custom_call.1} parent=1 // pred_check_branch
      %41 = sbr.rel (0) target = $region17
    $region16: #{tpu_custom_call.1} parent=1 // pred_region
      %s43 = ssub.s32 2048, 2048
      %44 = vsyncadd [#allocation6], %s43
      %s45 = sshll.u32 [#allocation7], 4
      %s46 = int_to_ptr.vmem [resolvable:$true] %s45
      %51 = dma.hbm_to_vmem [thread:$0]  %s3, 2048, %s46, [#allocation6], 128, 128, 8
    $region17: #{tpu_custom_call.1} parent=1 // pred_fallthru
      _
    // Predicated region
    $region18: #{tpu_custom_call.1} parent=1 // pred_check
      _
    $region19: #{tpu_custom_call.1} parent=1 // pred_check_branch
      %53 = sbr.rel (0) target = $region21
    $region20: #{tpu_custom_call.1} parent=1 // pred_region
      _
    $region21: #{tpu_custom_call.1} parent=1 // pred_fallthru
      _
    // Predicated region
    $region22: #{tpu_custom_call.1} parent=1 // pred_check
      _
    $region23: #{tpu_custom_call.1} parent=1 // pred_check_branch
      %55 = sbr.rel (0) target = $region25
    $region24: #{tpu_custom_call.1} parent=1 // pred_region
      %s57 = ssub.s32 2048, 2048
      %58 = vsyncadd [#allocation9], %s57
      %s59 = sshll.u32 [#allocation8], 4
      %s60 = int_to_ptr.vmem [resolvable:$true] %s59
      %65 = dma.hbm_to_vmem [thread:$0]  %s5, 2048, %s60, [#allocation9], 128, 128, 8
    $region25: #{tpu_custom_call.1} parent=1 // pred_fallthru
      _
    // Predicated region
    $region26: #{tpu_custom_call.1} parent=1 // pred_check
      _
    $region27: #{tpu_custom_call.1} parent=1 // pred_check_branch
      %67 = sbr.rel (0) target = $region29
    $region28: #{tpu_custom_call.1} parent=1 // pred_region
      _
    $region29: #{tpu_custom_call.1} parent=1 // pred_fallthru
      _
    // Predicated region
    $region30: #{tpu_custom_call.1} parent=1 // pred_check
      _
    $region31: #{tpu_custom_call.1} parent=1 // pred_check_branch
      %69 = sbr.rel (0) target = $region33
    $region32: #{tpu_custom_call.1} parent=1 // pred_region
      %70 = dma.done [#allocation3], 128
    $region33: #{tpu_custom_call.1} parent=1 // pred_fallthru
      _
    // Predicated region
    $region34: #{tpu_custom_call.1} parent=1 // pred_check
      _
    $region35: #{tpu_custom_call.1} parent=1 // pred_check_branch
      %72 = sbr.rel (0) target = $region37
    $region36: #{tpu_custom_call.1} parent=1 // pred_region
      %73 = dma.done [#allocation6], 2048
    $region37: #{tpu_custom_call.1} parent=1 // pred_fallthru
      _
    // Predicated region
    $region38: #{tpu_custom_call.1} parent=1 // pred_check
      _
    $region39: #{tpu_custom_call.1} parent=1 // pred_check_branch
      %75 = sbr.rel (0) target = $region41
    $region40: #{tpu_custom_call.1} parent=1 // pred_region
      %76 = dma.done [#allocation6], 2048
    $region41: #{tpu_custom_call.1} parent=1 // pred_fallthru
      _
    // Predicated region
    $region42: #{tpu_custom_call.1} parent=1 // pred_check
      _
    $region43: #{tpu_custom_call.1} parent=1 // pred_check_branch
      %78 = sbr.rel (0) target = $region45
    $region44: #{tpu_custom_call.1} parent=1 // pred_region
      %79 = dma.done [#allocation9], 2048
    $region45: #{tpu_custom_call.1} parent=1 // pred_fallthru
      _
    %v80 = vld [vmem:[#allocation2] sm:$0xff]
    %v81 = vld [vmem:[#allocation5] sm:$0xff]
    %v82 = vld [vmem:[#allocation5 + $0x8] sm:$0xff]
    %v83 = vld [vmem:[#allocation5 + $0x10] sm:$0xff]
    %v84 = vld [vmem:[#allocation5 + $0x18] sm:$0xff]
    %v85 = vld [vmem:[#allocation5 + $0x20] sm:$0xff]
    %v86 = vld [vmem:[#allocation5 + $0x28] sm:$0xff]
    %v87 = vld [vmem:[#allocation5 + $0x30] sm:$0xff]
    %v88 = vld [vmem:[#allocation5 + $0x38] sm:$0xff]
    %v89 = vld [vmem:[#allocation5 + $0x40] sm:$0xff]
    %v90 = vld [vmem:[#allocation5 + $0x48] sm:$0xff]
    %v91 = vld [vmem:[#allocation5 + $0x50] sm:$0xff]
    %v92 = vld [vmem:[#allocation5 + $0x58] sm:$0xff]
    %v93 = vld [vmem:[#allocation5 + $0x60] sm:$0xff]
    %v94 = vld [vmem:[#allocation5 + $0x68] sm:$0xff]
    %v95 = vld [vmem:[#allocation5 + $0x70] sm:$0xff]
    %v96 = vld [vmem:[#allocation5 + $0x78] sm:$0xff]
    %v97 = vld [vmem:[%s2] sm:$0x1]
    %v99 = vlaneseq
    %v100 = vshrl.u32 %v99, 7
    %v101 = vsub.s32 0, %v100
    %v102 = vrot.slane %v97, %v101
    %104 = vmatprep.subr.mxu0 0.0
    %105 = vmatpush1.msra.mxu0 %v96
    %106 = vmatprep.subr.mxu0 0.0
    %107 = vmatpush1.msra.mxu0 %v95
    %108 = vmatprep.subr.mxu0 0.0
    %109 = vmatpush1.msra.mxu0 %v94
    %110 = vmatprep.subr.mxu0 0.0
    %111 = vmatpush1.msra.mxu0 %v93
    %112 = vmatprep.subr.mxu0 0.0
    %113 = vmatpush1.msra.mxu0 %v92
    %114 = vmatprep.subr.mxu0 0.0
    %115 = vmatpush1.msra.mxu0 %v91
    %116 = vmatprep.subr.mxu0 0.0
    %117 = vmatpush1.msra.mxu0 %v90
    %118 = vmatprep.subr.mxu0 0.0
    %119 = vmatpush1.msra.mxu0 %v89
    %120 = vmatprep.subr.mxu0 0.0
    %121 = vmatpush1.msra.mxu0 %v88
    %122 = vmatprep.subr.mxu0 0.0
    %123 = vmatpush1.msra.mxu0 %v87
    %124 = vmatprep.subr.mxu0 0.0
    %125 = vmatpush1.msra.mxu0 %v86
    %126 = vmatprep.subr.mxu0 0.0
    %127 = vmatpush1.msra.mxu0 %v85
    %128 = vmatprep.subr.mxu0 0.0
    %129 = vmatpush1.msra.mxu0 %v84
    %130 = vmatprep.subr.mxu0 0.0
    %131 = vmatpush1.msra.mxu0 %v83
    %132 = vmatprep.subr.mxu0 0.0
    %133 = vmatpush1.msra.mxu0 %v82
    %134 = vmatprep.subr.mxu0 0.0
    %135 = vmatpush1.msra.mxu0 %v81
    %136 = vmatprep.subr.mxu0 0.0
    %137 = vmatpush2.msra.mxu0 0.0
    %138 = vmatprep.subr.mxu0 0.0
    %139 = vmatpush2.msra.mxu0 0.0
    %140 = vmatprep.subr.mxu0 0.0
    %141 = vmatpush2.msra.mxu0 0.0
    %142 = vmatprep.subr.mxu0 0.0
    %143 = vmatpush2.msra.mxu0 0.0
    %144 = vmatprep.subr.mxu0 0.0
    %145 = vmatpush2.msra.mxu0 0.0
    %146 = vmatprep.subr.mxu0 0.0
    %147 = vmatpush2.msra.mxu0 0.0
    %148 = vmatprep.subr.mxu0 0.0
    %149 = vmatpush2.msra.mxu0 0.0
    %150 = vmatprep.subr.mxu0 0.0
    %151 = vmatpush2.msra.mxu0 0.0
    %152 = vmatprep.subr.mxu0 0.0
    %153 = vmatpush2.msra.mxu0 0.0
    %154 = vmatprep.subr.mxu0 0.0
    %155 = vmatpush2.msra.mxu0 0.0
    %156 = vmatprep.subr.mxu0 0.0
    %157 = vmatpush2.msra.mxu0 0.0
    %158 = vmatprep.subr.mxu0 0.0
    %159 = vmatpush2.msra.mxu0 0.0
    %160 = vmatprep.subr.mxu0 0.0
    %161 = vmatpush2.msra.mxu0 0.0
    %162 = vmatprep.subr.mxu0 0.0
    %163 = vmatpush2.msra.mxu0 0.0
    %164 = vmatprep.subr.mxu0 0.0
    %165 = vmatpush2.msra.mxu0 0.0
    %166 = vmatprep.subr.mxu0 0.0
    %167 = vmatpush2.msra.mxu0 0.0
    %168 = vmatprep.mubr.f32.mxu0 0.0
    %169 = vmatmul.mubr.f32.gmra.mxu0 %v80
    %v170 = vpop.f32.mrf.mxu0
    %v171 = vadd.f32 %v102, %v170
    %v172 = vpop.f32.mrf.mxu0
    %173 = vdwg.mxu0
    %v174 = vmax.f32 %v171, 0.0
    %v175 = vld [vmem:[#allocation7] sm:$0xff]
    %v176 = vld [vmem:[#allocation7 + $0x8] sm:$0xff]
    %v177 = vld [vmem:[#allocation7 + $0x10] sm:$0xff]
    %v178 = vld [vmem:[#allocation7 + $0x18] sm:$0xff]
    %v179 = vld [vmem:[#allocation7 + $0x20] sm:$0xff]
    %v180 = vld [vmem:[#allocation7 + $0x28] sm:$0xff]
    %v181 = vld [vmem:[#allocation7 + $0x30] sm:$0xff]
    %v182 = vld [vmem:[#allocation7 + $0x38] sm:$0xff]
    %v183 = vld [vmem:[#allocation7 + $0x40] sm:$0xff]
    %v184 = vld [vmem:[#allocation7 + $0x48] sm:$0xff]
    %v185 = vld [vmem:[#allocation7 + $0x50] sm:$0xff]
    %v186 = vld [vmem:[#allocation7 + $0x58] sm:$0xff]
    %v187 = vld [vmem:[#allocation7 + $0x60] sm:$0xff]
    %v188 = vld [vmem:[#allocation7 + $0x68] sm:$0xff]
    %v189 = vld [vmem:[#allocation7 + $0x70] sm:$0xff]
    %v190 = vld [vmem:[#allocation7 + $0x78] sm:$0xff]
    %v191 = vld [vmem:[%s4] sm:$0x1]
    %v193 = vlaneseq
    %v194 = vshrl.u32 %v193, 7
    %v195 = vsub.s32 0, %v194
    %v196 = vrot.slane %v191, %v195
    %198 = vmatprep.subr.mxu0 0.0
    %199 = vmatpush1.msra.mxu0 %v190
    %200 = vmatprep.subr.mxu0 0.0
    %201 = vmatpush1.msra.mxu0 %v189
    %202 = vmatprep.subr.mxu0 0.0
    %203 = vmatpush1.msra.mxu0 %v188
    %204 = vmatprep.subr.mxu0 0.0
    %205 = vmatpush1.msra.mxu0 %v187
    %206 = vmatprep.subr.mxu0 0.0
    %207 = vmatpush1.msra.mxu0 %v186
    %208 = vmatprep.subr.mxu0 0.0
    %209 = vmatpush1.msra.mxu0 %v185
    %210 = vmatprep.subr.mxu0 0.0
    %211 = vmatpush1.msra.mxu0 %v184
    %212 = vmatprep.subr.mxu0 0.0
    %213 = vmatpush1.msra.mxu0 %v183
    %214 = vmatprep.subr.mxu0 0.0
    %215 = vmatpush1.msra.mxu0 %v182
    %216 = vmatprep.subr.mxu0 0.0
    %217 = vmatpush1.msra.mxu0 %v181
    %218 = vmatprep.subr.mxu0 0.0
    %219 = vmatpush1.msra.mxu0 %v180
    %220 = vmatprep.subr.mxu0 0.0
    %221 = vmatpush1.msra.mxu0 %v179
    %222 = vmatprep.subr.mxu0 0.0
    %223 = vmatpush1.msra.mxu0 %v178
    %224 = vmatprep.subr.mxu0 0.0
    %225 = vmatpush1.msra.mxu0 %v177
    %226 = vmatprep.subr.mxu0 0.0
    %227 = vmatpush1.msra.mxu0 %v176
    %228 = vmatprep.subr.mxu0 0.0
    %229 = vmatpush1.msra.mxu0 %v175
    %230 = vmatprep.subr.mxu0 0.0
    %231 = vmatpush2.msra.mxu0 0.0
    %232 = vmatprep.subr.mxu0 0.0
    %233 = vmatpush2.msra.mxu0 0.0
    %234 = vmatprep.subr.mxu0 0.0
    %235 = vmatpush2.msra.mxu0 0.0
    %236 = vmatprep.subr.mxu0 0.0
    %237 = vmatpush2.msra.mxu0 0.0
    %238 = vmatprep.subr.mxu0 0.0
    %239 = vmatpush2.msra.mxu0 0.0
    %240 = vmatprep.subr.mxu0 0.0
    %241 = vmatpush2.msra.mxu0 0.0
    %242 = vmatprep.subr.mxu0 0.0
    %243 = vmatpush2.msra.mxu0 0.0
    %244 = vmatprep.subr.mxu0 0.0
    %245 = vmatpush2.msra.mxu0 0.0
    %246 = vmatprep.subr.mxu0 0.0
    %247 = vmatpush2.msra.mxu0 0.0
    %248 = vmatprep.subr.mxu0 0.0
    %249 = vmatpush2.msra.mxu0 0.0
    %250 = vmatprep.subr.mxu0 0.0
    %251 = vmatpush2.msra.mxu0 0.0
    %252 = vmatprep.subr.mxu0 0.0
    %253 = vmatpush2.msra.mxu0 0.0
    %254 = vmatprep.subr.mxu0 0.0
    %255 = vmatpush2.msra.mxu0 0.0
    %256 = vmatprep.subr.mxu0 0.0
    %257 = vmatpush2.msra.mxu0 0.0
    %258 = vmatprep.subr.mxu0 0.0
    %259 = vmatpush2.msra.mxu0 0.0
    %260 = vmatprep.subr.mxu0 0.0
    %261 = vmatpush2.msra.mxu0 0.0
    %262 = vmatprep.mubr.f32.mxu0 0.0
    %263 = vmatmul.mubr.f32.gmra.mxu0 %v174
    %v264 = vpop.f32.mrf.mxu0
    %v265 = vadd.f32 %v196, %v264
    %v266 = vpop.f32.mrf.mxu0
    %267 = vdwg.mxu0
    %v268 = vmax.f32 %v265, 0.0
    %v269 = vld [vmem:[#allocation8] sm:$0xff]
    %v270 = vld [vmem:[#allocation8 + $0x8] sm:$0xff]
    %v271 = vld [vmem:[#allocation8 + $0x10] sm:$0xff]
    %v272 = vld [vmem:[#allocation8 + $0x18] sm:$0xff]
    %v273 = vld [vmem:[#allocation8 + $0x20] sm:$0xff]
    %v274 = vld [vmem:[#allocation8 + $0x28] sm:$0xff]
    %v275 = vld [vmem:[#allocation8 + $0x30] sm:$0xff]
    %v276 = vld [vmem:[#allocation8 + $0x38] sm:$0xff]
    %v277 = vld [vmem:[#allocation8 + $0x40] sm:$0xff]
    %v278 = vld [vmem:[#allocation8 + $0x48] sm:$0xff]
    %v279 = vld [vmem:[#allocation8 + $0x50] sm:$0xff]
    %v280 = vld [vmem:[#allocation8 + $0x58] sm:$0xff]
    %v281 = vld [vmem:[#allocation8 + $0x60] sm:$0xff]
    %v282 = vld [vmem:[#allocation8 + $0x68] sm:$0xff]
    %v283 = vld [vmem:[#allocation8 + $0x70] sm:$0xff]
    %v284 = vld [vmem:[#allocation8 + $0x78] sm:$0xff]
    %v285 = vld [vmem:[%s6] sm:$0x1]
    %v287 = vlaneseq
    %v288 = vshrl.u32 %v287, 7
    %v289 = vsub.s32 0, %v288
    %v290 = vrot.slane %v285, %v289
    %292 = vmatprep.subr.mxu0 0.0
    %293 = vmatpush1.msra.mxu0 %v284
    %294 = vmatprep.subr.mxu0 0.0
    %295 = vmatpush1.msra.mxu0 %v283
    %296 = vmatprep.subr.mxu0 0.0
    %297 = vmatpush1.msra.mxu0 %v282
    %298 = vmatprep.subr.mxu0 0.0
    %299 = vmatpush1.msra.mxu0 %v281
    %300 = vmatprep.subr.mxu0 0.0
    %301 = vmatpush1.msra.mxu0 %v280
    %302 = vmatprep.subr.mxu0 0.0
    %303 = vmatpush1.msra.mxu0 %v279
    %304 = vmatprep.subr.mxu0 0.0
    %305 = vmatpush1.msra.mxu0 %v278
    %306 = vmatprep.subr.mxu0 0.0
    %307 = vmatpush1.msra.mxu0 %v277
    %308 = vmatprep.subr.mxu0 0.0
    %309 = vmatpush1.msra.mxu0 %v276
    %310 = vmatprep.subr.mxu0 0.0
    %311 = vmatpush1.msra.mxu0 %v275
    %312 = vmatprep.subr.mxu0 0.0
    %313 = vmatpush1.msra.mxu0 %v274
    %314 = vmatprep.subr.mxu0 0.0
    %315 = vmatpush1.msra.mxu0 %v273
    %316 = vmatprep.subr.mxu0 0.0
    %317 = vmatpush1.msra.mxu0 %v272
    %318 = vmatprep.subr.mxu0 0.0
    %319 = vmatpush1.msra.mxu0 %v271
    %320 = vmatprep.subr.mxu0 0.0
    %321 = vmatpush1.msra.mxu0 %v270
    %322 = vmatprep.subr.mxu0 0.0
    %323 = vmatpush1.msra.mxu0 %v269
    %324 = vmatprep.subr.mxu0 0.0
    %325 = vmatpush2.msra.mxu0 0.0
    %326 = vmatprep.subr.mxu0 0.0
    %327 = vmatpush2.msra.mxu0 0.0
    %328 = vmatprep.subr.mxu0 0.0
    %329 = vmatpush2.msra.mxu0 0.0
    %330 = vmatprep.subr.mxu0 0.0
    %331 = vmatpush2.msra.mxu0 0.0
    %332 = vmatprep.subr.mxu0 0.0
    %333 = vmatpush2.msra.mxu0 0.0
    %334 = vmatprep.subr.mxu0 0.0
    %335 = vmatpush2.msra.mxu0 0.0
    %336 = vmatprep.subr.mxu0 0.0
    %337 = vmatpush2.msra.mxu0 0.0
    %338 = vmatprep.subr.mxu0 0.0
    %339 = vmatpush2.msra.mxu0 0.0
    %340 = vmatprep.subr.mxu0 0.0
    %341 = vmatpush2.msra.mxu0 0.0
    %342 = vmatprep.subr.mxu0 0.0
    %343 = vmatpush2.msra.mxu0 0.0
    %344 = vmatprep.subr.mxu0 0.0
    %345 = vmatpush2.msra.mxu0 0.0
    %346 = vmatprep.subr.mxu0 0.0
    %347 = vmatpush2.msra.mxu0 0.0
    %348 = vmatprep.subr.mxu0 0.0
    %349 = vmatpush2.msra.mxu0 0.0
    %350 = vmatprep.subr.mxu0 0.0
    %351 = vmatpush2.msra.mxu0 0.0
    %352 = vmatprep.subr.mxu0 0.0
    %353 = vmatpush2.msra.mxu0 0.0
    %354 = vmatprep.subr.mxu0 0.0
    %355 = vmatpush2.msra.mxu0 0.0
    %356 = vmatprep.mubr.f32.mxu0 0.0
    %357 = vmatmul.mubr.f32.gmra.mxu0 %v268
    %v358 = vpop.f32.mrf.mxu0
    %v359 = vadd.f32 %v290, %v358
    %v360 = vpop.f32.mrf.mxu0
    %361 = vdwg.mxu0
    %362 = vst [vmem:[#allocation10] sm:$0xff] %v359
    // Predicated region
    $region46: #{tpu_custom_call.1} parent=1 // pred_check
      _
    $region47: #{tpu_custom_call.1} parent=1 // pred_check_branch
      %364 = sbr.rel (0) target = $region49
    $region48: #{tpu_custom_call.1} parent=1 // pred_region
      %s366 = ssub.s32 128, 128
      %367 = vsyncadd [#allocation4], %s366
      %s369 = sshll.u32 [#allocation10], 4
      %s370 = int_to_ptr.vmem [resolvable:$true] %s369
      %372 = dma.vmem_to_hbm [thread:$0]  %s370, 128, %s7, [#allocation4]
    $region49: #{tpu_custom_call.1} parent=1 // pred_fallthru
      _
    // Predicated region
    $region50: #{tpu_custom_call.1} parent=1 // pred_check
      _
    $region51: #{tpu_custom_call.1} parent=1 // pred_check_branch
      %374 = sbr.rel (0) target = $region53
    $region52: #{tpu_custom_call.1} parent=1 // pred_region
      %375 = dma.done [#allocation4], 128
    $region53: #{tpu_custom_call.1} parent=1 // pred_fallthru
      _
    %376 = vsyncpa [#allocation3], 1
    %377 = vsyncpa [#allocation6], 1
    %378 = vsyncpa [#allocation9], 1
    %379 = vsyncpa [#allocation4], 1

// kernel: tpu_custom_call.1
$region0: #{tpu_custom_call.1}
  #allocation0 [shape = 'u32[]', space=smem, size = 0x4, offset = 0x4, fixed_abs, tag = 'smem constant byte address 0x4 - core index']
  #allocation1 [shape = 'u32[144,128]{1,0:T(1,128)}', space=vmem, size = 0x12000, scoped, tag = 'internal scratch']
  %s0 = inlined_call_operand.hbm [shape: f32[8,128], index: 0, kind: input, shape index: {}]
  %s1 = inlined_call_operand.hbm [shape: f32[128,128], index: 1, kind: input, shape index: {}]
  %s2 = inlined_call_operand.vmem [shape: f32[1,128], index: 2, kind: input, shape index: {}]
  %s3 = inlined_call_operand.hbm [shape: f32[128,128], index: 3, kind: input, shape index: {}]
  %s4 = inlined_call_operand.vmem [shape: f32[1,128], index: 4, kind: input, shape index: {}]
  %s5 = inlined_call_operand.hbm [shape: f32[128,128], index: 5, kind: input, shape index: {}]
  %s6 = inlined_call_operand.vmem [shape: f32[1,128], index: 6, kind: input, shape index: {}]
  %s7 = inlined_call_operand.hbm [shape: f32[8,128], index: 7, kind: output, shape index: {}]
  %s8 = sld [smem:[#allocation0]]
  $region54: #{tpu_custom_call.1} parent=0
    _
  %s10 = ssub.s32 1, %s8
  %s11 = scalar_select 0, %s10, %s8
  $region1: #{tpu_custom_call.1} parent=0
    #allocation2 [shape = 'u8[4096]{0}', space=vmem, size = 0x1000, scoped, tag = 'input window, operand 0, single buffered']
    #allocation3 [shape = 's32[1]{0}', space=sflag, size = 0x4, scoped, tag = 'scoped memory for tpu_custom_call.1']
    #allocation4 [shape = 's32[1]{0}', space=sflag, size = 0x4, scoped, tag = 'scoped memory for tpu_custom_call.1']
    #allocation5 [shape = 'u8[65536]{0}', space=vmem, size = 0x10000, scoped, tag = 'input window, operand 1, single buffered']
    #allocation6 [shape = 's32[1]{0}', space=sflag, size = 0x4, scoped, tag = 'scoped memory for tpu_custom_call.1']
    #allocation7 [shape = 'u8[65536]{0}', space=vmem, size = 0x10000, scoped, tag = 'input window, operand 3, single buffered']
    #allocation8 [shape = 'u8[65536]{0}', space=vmem, size = 0x10000, scoped, tag = 'input window, operand 5, single buffered']
    #allocation9 [shape = 's32[1]{0}', space=sflag, size = 0x4, scoped, tag = 'scoped memory for tpu_custom_call.1']
    #allocation10 [shape = 'u8[4096]{0}', space=vmem, size = 0x1000, scoped, tag = 'output window, operand 0, single buffered']
    %12 = vsyncpa [#allocation3], 0
    %13 = vsyncpa [#allocation6], 0
    %14 = vsyncpa [#allocation9], 0
    %15 = vsyncpa [#allocation4], 0
    // Predicated region
    $region2: #{tpu_custom_call.1} parent=1 // pred_check
      _
    $region3: #{tpu_custom_call.1} parent=1 // pred_check_branch
      %17 = sbr.rel (0) target = $region5
    $region4: #{tpu_custom_call.1} parent=1 // pred_region
      %s19 = ssub.s32 128, 128
      %20 = vsyncadd [#allocation3], %s19
      %s22 = sshll.u32 [#allocation2], 4
      %s23 = int_to_ptr.vmem [resolvable:$true] %s22
      %25 = dma.hbm_to_vmem [thread:$0]  %s0, 128, %s23, [#allocation3]
    $region5: #{tpu_custom_call.1} parent=1 // pred_fallthru
      _
    // Predicated region
    $region6: #{tpu_custom_call.1} parent=1 // pred_check
      _
    $region7: #{tpu_custom_call.1} parent=1 // pred_check_branch
      %27 = sbr.rel (0) target = $region9
    $region8: #{tpu_custom_call.1} parent=1 // pred_region
      %s29 = ssub.s32 2048, 2048
      %30 = vsyncadd [#allocation6], %s29
      %s31 = sshll.u32 [#allocation5], 4
      %s32 = int_to_ptr.vmem [resolvable:$true] %s31
      %37 = dma.hbm_to_vmem [thread:$0]  %s1, 2048, %s32, [#allocation6], 128, 128, 8
    $region9: #{tpu_custom_call.1} parent=1 // pred_fallthru
      _
    // Predicated region
    $region10: #{tpu_custom_call.1} parent=1 // pred_check
      _
    $region11: #{tpu_custom_call.1} parent=1 // pred_check_branch
      %39 = sbr.rel (0) target = $region13
    $region12: #{tpu_custom_call.1} parent=1 // pred_region
      _
    $region13: #{tpu_custom_call.1} parent=1 // pred_fallthru
      _
    // Predicated region
    $region14: #{tpu_custom_call.1} parent=1 // pred_check
      _
    $region15: #{tpu_custom_call.1} parent=1 // pred_check_branch
      %41 = sbr.rel (0) target = $region17
    $region16: #{tpu_custom_call.1} parent=1 // pred_region
      %s43 = ssub.s32 2048, 2048
      %44 = vsyncadd [#allocation6], %s43
      %s45 = sshll.u32 [#allocation7], 4
      %s46 = int_to_ptr.vmem [resolvable:$true] %s45
      %51 = dma.hbm_to_vmem [thread:$0]  %s3, 2048, %s46, [#allocation6], 128, 128, 8
    $region17: #{tpu_custom_call.1} parent=1 // pred_fallthru
      _
    // Predicated region
    $region18: #{tpu_custom_call.1} parent=1 // pred_check
      _
    $region19: #{tpu_custom_call.1} parent=1 // pred_check_branch
      %53 = sbr.rel (0) target = $region21
    $region20: #{tpu_custom_call.1} parent=1 // pred_region
      _
    $region21: #{tpu_custom_call.1} parent=1 // pred_fallthru
      _
    // Predicated region
    $region22: #{tpu_custom_call.1} parent=1 // pred_check
      _
    $region23: #{tpu_custom_call.1} parent=1 // pred_check_branch
      %55 = sbr.rel (0) target = $region25
    $region24: #{tpu_custom_call.1} parent=1 // pred_region
      %s57 = ssub.s32 2048, 2048
      %58 = vsyncadd [#allocation9], %s57
      %s59 = sshll.u32 [#allocation8], 4
      %s60 = int_to_ptr.vmem [resolvable:$true] %s59
      %65 = dma.hbm_to_vmem [thread:$0]  %s5, 2048, %s60, [#allocation9], 128, 128, 8
    $region25: #{tpu_custom_call.1} parent=1 // pred_fallthru
      _
    // Predicated region
    $region26: #{tpu_custom_call.1} parent=1 // pred_check
      _
    $region27: #{tpu_custom_call.1} parent=1 // pred_check_branch
      %67 = sbr.rel (0) target = $region29
    $region28: #{tpu_custom_call.1} parent=1 // pred_region
      _
    $region29: #{tpu_custom_call.1} parent=1 // pred_fallthru
      _
    // Predicated region
    $region30: #{tpu_custom_call.1} parent=1 // pred_check
      _
    $region31: #{tpu_custom_call.1} parent=1 // pred_check_branch
      %69 = sbr.rel (0) target = $region33
    $region32: #{tpu_custom_call.1} parent=1 // pred_region
      %70 = dma.done [#allocation3], 128
    $region33: #{tpu_custom_call.1} parent=1 // pred_fallthru
      _
    // Predicated region
    $region34: #{tpu_custom_call.1} parent=1 // pred_check
      _
    $region35: #{tpu_custom_call.1} parent=1 // pred_check_branch
      %72 = sbr.rel (0) target = $region37
    $region36: #{tpu_custom_call.1} parent=1 // pred_region
      %73 = dma.done [#allocation6], 2048
    $region37: #{tpu_custom_call.1} parent=1 // pred_fallthru
      _
    // Predicated region
    $region38: #{tpu_custom_call.1} parent=1 // pred_check
      _
    $region39: #{tpu_custom_call.1} parent=1 // pred_check_branch
      %75 = sbr.rel (0) target = $region41
    $region40: #{tpu_custom_call.1} parent=1 // pred_region
      %76 = dma.done [#allocation6], 2048
    $region41: #{tpu_custom_call.1} parent=1 // pred_fallthru
      _
    // Predicated region
    $region42: #{tpu_custom_call.1} parent=1 // pred_check
      _
    $region43: #{tpu_custom_call.1} parent=1 // pred_check_branch
      %78 = sbr.rel (0) target = $region45
    $region44: #{tpu_custom_call.1} parent=1 // pred_region
      %79 = dma.done [#allocation9], 2048
    $region45: #{tpu_custom_call.1} parent=1 // pred_fallthru
      _
    %v80 = vld [vmem:[#allocation2] sm:$0xff]
    %v81 = vld [vmem:[#allocation5] sm:$0xff]
    %v82 = vld [vmem:[#allocation5 + $0x8] sm:$0xff]
    %v83 = vld [vmem:[#allocation5 + $0x10] sm:$0xff]
    %v84 = vld [vmem:[#allocation5 + $0x18] sm:$0xff]
    %v85 = vld [vmem:[#allocation5 + $0x20] sm:$0xff]
    %v86 = vld [vmem:[#allocation5 + $0x28] sm:$0xff]
    %v87 = vld [vmem:[#allocation5 + $0x30] sm:$0xff]
    %v88 = vld [vmem:[#allocation5 + $0x38] sm:$0xff]
    %v89 = vld [vmem:[#allocation5 + $0x40] sm:$0xff]
    %v90 = vld [vmem:[#allocation5 + $0x48] sm:$0xff]
    %v91 = vld [vmem:[#allocation5 + $0x50] sm:$0xff]
    %v92 = vld [vmem:[#allocation5 + $0x58] sm:$0xff]
    %v93 = vld [vmem:[#allocation5 + $0x60] sm:$0xff]
    %v94 = vld [vmem:[#allocation5 + $0x68] sm:$0xff]
    %v95 = vld [vmem:[#allocation5 + $0x70] sm:$0xff]
    %v96 = vld [vmem:[#allocation5 + $0x78] sm:$0xff]
    %v97 = vld [vmem:[%s2] sm:$0x1]
    %v99 = vlaneseq
    %v100 = vshrl.u32 %v99, 7
    %v101 = vsub.s32 0, %v100
    %v102 = vrot.slane %v97, %v101
    %104 = vmatprep.subr.mxu0 0.0
    %105 = vmatpush1.msra.mxu0 %v96
    %106 = vmatprep.subr.mxu0 0.0
    %107 = vmatpush1.msra.mxu0 %v95
    %108 = vmatprep.subr.mxu0 0.0
    %109 = vmatpush1.msra.mxu0 %v94
    %110 = vmatprep.subr.mxu0 0.0
    %111 = vmatpush1.msra.mxu0 %v93
    %112 = vmatprep.subr.mxu0 0.0
    %113 = vmatpush1.msra.mxu0 %v92
    %114 = vmatprep.subr.mxu0 0.0
    %115 = vmatpush1.msra.mxu0 %v91
    %116 = vmatprep.subr.mxu0 0.0
    %117 = vmatpush1.msra.mxu0 %v90
    %118 = vmatprep.subr.mxu0 0.0
    %119 = vmatpush1.msra.mxu0 %v89
    %120 = vmatprep.subr.mxu0 0.0
    %121 = vmatpush1.msra.mxu0 %v88
    %122 = vmatprep.subr.mxu0 0.0
    %123 = vmatpush1.msra.mxu0 %v87
    %124 = vmatprep.subr.mxu0 0.0
    %125 = vmatpush1.msra.mxu0 %v86
    %126 = vmatprep.subr.mxu0 0.0
    %127 = vmatpush1.msra.mxu0 %v85
    %128 = vmatprep.subr.mxu0 0.0
    %129 = vmatpush1.msra.mxu0 %v84
    %130 = vmatprep.subr.mxu0 0.0
    %131 = vmatpush1.msra.mxu0 %v83
    %132 = vmatprep.subr.mxu0 0.0
    %133 = vmatpush1.msra.mxu0 %v82
    %134 = vmatprep.subr.mxu0 0.0
    %135 = vmatpush1.msra.mxu0 %v81
    %136 = vmatprep.subr.mxu0 0.0
    %137 = vmatpush2.msra.mxu0 0.0
    %138 = vmatprep.subr.mxu0 0.0
    %139 = vmatpush2.msra.mxu0 0.0
    %140 = vmatprep.subr.mxu0 0.0
    %141 = vmatpush2.msra.mxu0 0.0
    %142 = vmatprep.subr.mxu0 0.0
    %143 = vmatpush2.msra.mxu0 0.0
    %144 = vmatprep.subr.mxu0 0.0
    %145 = vmatpush2.msra.mxu0 0.0
    %146 = vmatprep.subr.mxu0 0.0
    %147 = vmatpush2.msra.mxu0 0.0
    %148 = vmatprep.subr.mxu0 0.0
    %149 = vmatpush2.msra.mxu0 0.0
    %150 = vmatprep.subr.mxu0 0.0
    %151 = vmatpush2.msra.mxu0 0.0
    %152 = vmatprep.subr.mxu0 0.0
    %153 = vmatpush2.msra.mxu0 0.0
    %154 = vmatprep.subr.mxu0 0.0
    %155 = vmatpush2.msra.mxu0 0.0
    %156 = vmatprep.subr.mxu0 0.0
    %157 = vmatpush2.msra.mxu0 0.0
    %158 = vmatprep.subr.mxu0 0.0
    %159 = vmatpush2.msra.mxu0 0.0
    %160 = vmatprep.subr.mxu0 0.0
    %161 = vmatpush2.msra.mxu0 0.0
    %162 = vmatprep.subr.mxu0 0.0
    %163 = vmatpush2.msra.mxu0 0.0
    %164 = vmatprep.subr.mxu0 0.0
    %165 = vmatpush2.msra.mxu0 0.0
    %166 = vmatprep.subr.mxu0 0.0
    %167 = vmatpush2.msra.mxu0 0.0
    %168 = vmatprep.mubr.f32.mxu0 0.0
    %169 = vmatmul.mubr.f32.gmra.mxu0 %v80
    %v170 = vpop.f32.mrf.mxu0
    %v171 = vadd.f32 %v102, %v170
    %v172 = vpop.f32.mrf.mxu0
    %173 = vdwg.mxu0
    %v174 = vmax.f32 %v171, 0.0
    %v175 = vld [vmem:[#allocation7] sm:$0xff]
    %v176 = vld [vmem:[#allocation7 + $0x8] sm:$0xff]
    %v177 = vld [vmem:[#allocation7 + $0x10] sm:$0xff]
    %v178 = vld [vmem:[#allocation7 + $0x18] sm:$0xff]
    %v179 = vld [vmem:[#allocation7 + $0x20] sm:$0xff]
    %v180 = vld [vmem:[#allocation7 + $0x28] sm:$0xff]
    %v181 = vld [vmem:[#allocation7 + $0x30] sm:$0xff]
    %v182 = vld [vmem:[#allocation7 + $0x38] sm:$0xff]
    %v183 = vld [vmem:[#allocation7 + $0x40] sm:$0xff]
    %v184 = vld [vmem:[#allocation7 + $0x48] sm:$0xff]
    %v185 = vld [vmem:[#allocation7 + $0x50] sm:$0xff]
    %v186 = vld [vmem:[#allocation7 + $0x58] sm:$0xff]
    %v187 = vld [vmem:[#allocation7 + $0x60] sm:$0xff]
    %v188 = vld [vmem:[#allocation7 + $0x68] sm:$0xff]
    %v189 = vld [vmem:[#allocation7 + $0x70] sm:$0xff]
    %v190 = vld [vmem:[#allocation7 + $0x78] sm:$0xff]
    %v191 = vld [vmem:[%s4] sm:$0x1]
    %v193 = vlaneseq
    %v194 = vshrl.u32 %v193, 7
    %v195 = vsub.s32 0, %v194
    %v196 = vrot.slane %v191, %v195
    %198 = vmatprep.subr.mxu0 0.0
    %199 = vmatpush1.msra.mxu0 %v190
    %200 = vmatprep.subr.mxu0 0.0
    %201 = vmatpush1.msra.mxu0 %v189
    %202 = vmatprep.subr.mxu0 0.0
    %203 = vmatpush1.msra.mxu0 %v188
    %204 = vmatprep.subr.mxu0 0.0
    %205 = vmatpush1.msra.mxu0 %v187
    %206 = vmatprep.subr.mxu0 0.0
    %207 = vmatpush1.msra.mxu0 %v186
    %208 = vmatprep.subr.mxu0 0.0
    %209 = vmatpush1.msra.mxu0 %v185
    %210 = vmatprep.subr.mxu0 0.0
    %211 = vmatpush1.msra.mxu0 %v184
    %212 = vmatprep.subr.mxu0 0.0
    %213 = vmatpush1.msra.mxu0 %v183
    %214 = vmatprep.subr.mxu0 0.0
    %215 = vmatpush1.msra.mxu0 %v182
    %216 = vmatprep.subr.mxu0 0.0
    %217 = vmatpush1.msra.mxu0 %v181
    %218 = vmatprep.subr.mxu0 0.0
    %219 = vmatpush1.msra.mxu0 %v180
    %220 = vmatprep.subr.mxu0 0.0
    %221 = vmatpush1.msra.mxu0 %v179
    %222 = vmatprep.subr.mxu0 0.0
    %223 = vmatpush1.msra.mxu0 %v178
    %224 = vmatprep.subr.mxu0 0.0
    %225 = vmatpush1.msra.mxu0 %v177
    %226 = vmatprep.subr.mxu0 0.0
    %227 = vmatpush1.msra.mxu0 %v176
    %228 = vmatprep.subr.mxu0 0.0
    %229 = vmatpush1.msra.mxu0 %v175
    %230 = vmatprep.subr.mxu0 0.0
    %231 = vmatpush2.msra.mxu0 0.0
    %232 = vmatprep.subr.mxu0 0.0
    %233 = vmatpush2.msra.mxu0 0.0
    %234 = vmatprep.subr.mxu0 0.0
    %235 = vmatpush2.msra.mxu0 0.0
    %236 = vmatprep.subr.mxu0 0.0
    %237 = vmatpush2.msra.mxu0 0.0
    %238 = vmatprep.subr.mxu0 0.0
    %239 = vmatpush2.msra.mxu0 0.0
    %240 = vmatprep.subr.mxu0 0.0
    %241 = vmatpush2.msra.mxu0 0.0
    %242 = vmatprep.subr.mxu0 0.0
    %243 = vmatpush2.msra.mxu0 0.0
    %244 = vmatprep.subr.mxu0 0.0
    %245 = vmatpush2.msra.mxu0 0.0
    %246 = vmatprep.subr.mxu0 0.0
    %247 = vmatpush2.msra.mxu0 0.0
    %248 = vmatprep.subr.mxu0 0.0
    %249 = vmatpush2.msra.mxu0 0.0
    %250 = vmatprep.subr.mxu0 0.0
    %251 = vmatpush2.msra.mxu0 0.0
    %252 = vmatprep.subr.mxu0 0.0
    %253 = vmatpush2.msra.mxu0 0.0
    %254 = vmatprep.subr.mxu0 0.0
    %255 = vmatpush2.msra.mxu0 0.0
    %256 = vmatprep.subr.mxu0 0.0
    %257 = vmatpush2.msra.mxu0 0.0
    %258 = vmatprep.subr.mxu0 0.0
    %259 = vmatpush2.msra.mxu0 0.0
    %260 = vmatprep.subr.mxu0 0.0
    %261 = vmatpush2.msra.mxu0 0.0
    %262 = vmatprep.mubr.f32.mxu0 0.0
    %263 = vmatmul.mubr.f32.gmra.mxu0 %v174
    %v264 = vpop.f32.mrf.mxu0
    %v265 = vadd.f32 %v196, %v264
    %v266 = vpop.f32.mrf.mxu0
    %267 = vdwg.mxu0
    %v268 = vmax.f32 %v265, 0.0
    %v269 = vld [vmem:[#allocation8] sm:$0xff]
    %v270 = vld [vmem:[#allocation8 + $0x8] sm:$0xff]
    %v271 = vld [vmem:[#allocation8 + $0x10] sm:$0xff]
    %v272 = vld [vmem:[#allocation8 + $0x18] sm:$0xff]
    %v273 = vld [vmem:[#allocation8 + $0x20] sm:$0xff]
    %v274 = vld [vmem:[#allocation8 + $0x28] sm:$0xff]
    %v275 = vld [vmem:[#allocation8 + $0x30] sm:$0xff]
    %v276 = vld [vmem:[#allocation8 + $0x38] sm:$0xff]
    %v277 = vld [vmem:[#allocation8 + $0x40] sm:$0xff]
    %v278 = vld [vmem:[#allocation8 + $0x48] sm:$0xff]
    %v279 = vld [vmem:[#allocation8 + $0x50] sm:$0xff]
    %v280 = vld [vmem:[#allocation8 + $0x58] sm:$0xff]
    %v281 = vld [vmem:[#allocation8 + $0x60] sm:$0xff]
    %v282 = vld [vmem:[#allocation8 + $0x68] sm:$0xff]
    %v283 = vld [vmem:[#allocation8 + $0x70] sm:$0xff]
    %v284 = vld [vmem:[#allocation8 + $0x78] sm:$0xff]
    %v285 = vld [vmem:[%s6] sm:$0x1]
    %v287 = vlaneseq
    %v288 = vshrl.u32 %v287, 7
    %v289 = vsub.s32 0, %v288
    %v290 = vrot.slane %v285, %v289
    %292 = vmatprep.subr.mxu0 0.0
    %293 = vmatpush1.msra.mxu0 %v284
    %294 = vmatprep.subr.mxu0 0.0
    %295 = vmatpush1.msra.mxu0 %v283
    %296 = vmatprep.subr.mxu0 0.0
    %297 = vmatpush1.msra.mxu0 %v282
    %298 = vmatprep.subr.mxu0 0.0
    %299 = vmatpush1.msra.mxu0 %v281
    %300 = vmatprep.subr.mxu0 0.0
    %301 = vmatpush1.msra.mxu0 %v280
    %302 = vmatprep.subr.mxu0 0.0
    %303 = vmatpush1.msra.mxu0 %v279
    %304 = vmatprep.subr.mxu0 0.0
    %305 = vmatpush1.msra.mxu0 %v278
    %306 = vmatprep.subr.mxu0 0.0
    %307 = vmatpush1.msra.mxu0 %v277
    %308 = vmatprep.subr.mxu0 0.0
    %309 = vmatpush1.msra.mxu0 %v276
    %310 = vmatprep.subr.mxu0 0.0
    %311 = vmatpush1.msra.mxu0 %v275
    %312 = vmatprep.subr.mxu0 0.0
    %313 = vmatpush1.msra.mxu0 %v274
    %314 = vmatprep.subr.mxu0 0.0
    %315 = vmatpush1.msra.mxu0 %v273
    %316 = vmatprep.subr.mxu0 0.0
    %317 = vmatpush1.msra.mxu0 %v272
    %318 = vmatprep.subr.mxu0 0.0
    %319 = vmatpush1.msra.mxu0 %v271
    %320 = vmatprep.subr.mxu0 0.0
    %321 = vmatpush1.msra.mxu0 %v270
    %322 = vmatprep.subr.mxu0 0.0
    %323 = vmatpush1.msra.mxu0 %v269
    %324 = vmatprep.subr.mxu0 0.0
    %325 = vmatpush2.msra.mxu0 0.0
    %326 = vmatprep.subr.mxu0 0.0
    %327 = vmatpush2.msra.mxu0 0.0
    %328 = vmatprep.subr.mxu0 0.0
    %329 = vmatpush2.msra.mxu0 0.0
    %330 = vmatprep.subr.mxu0 0.0
    %331 = vmatpush2.msra.mxu0 0.0
    %332 = vmatprep.subr.mxu0 0.0
    %333 = vmatpush2.msra.mxu0 0.0
    %334 = vmatprep.subr.mxu0 0.0
    %335 = vmatpush2.msra.mxu0 0.0
    %336 = vmatprep.subr.mxu0 0.0
    %337 = vmatpush2.msra.mxu0 0.0
    %338 = vmatprep.subr.mxu0 0.0
    %339 = vmatpush2.msra.mxu0 0.0
    %340 = vmatprep.subr.mxu0 0.0
    %341 = vmatpush2.msra.mxu0 0.0
    %342 = vmatprep.subr.mxu0 0.0
    %343 = vmatpush2.msra.mxu0 0.0
    %344 = vmatprep.subr.mxu0 0.0
    %345 = vmatpush2.msra.mxu0 0.0
    %346 = vmatprep.subr.mxu0 0.0
    %347 = vmatpush2.msra.mxu0 0.0
    %348 = vmatprep.subr.mxu0 0.0
    %349 = vmatpush2.msra.mxu0 0.0
    %350 = vmatprep.subr.mxu0 0.0
    %351 = vmatpush2.msra.mxu0 0.0
    %352 = vmatprep.subr.mxu0 0.0
    %353 = vmatpush2.msra.mxu0 0.0
    %354 = vmatprep.subr.mxu0 0.0
    %355 = vmatpush2.msra.mxu0 0.0
    %356 = vmatprep.mubr.f32.mxu0 0.0
    %357 = vmatmul.mubr.f32.gmra.mxu0 %v268
    %v358 = vpop.f32.mrf.mxu0
    %v359 = vadd.f32 %v290, %v358
    %v360 = vpop.f32.mrf.mxu0
    %361 = vdwg.mxu0
    %362 = vst [vmem:[#allocation10] sm:$0xff] %v359
    // Predicated region
    $region46: #{tpu_custom_call.1} parent=1 // pred_check
      _
    $region47: #{tpu_custom_call.1} parent=1 // pred_check_branch
      %364 = sbr.rel (0) target = $region49
    $region48: #{tpu_custom_call.1} parent=1 // pred_region
      %s366 = ssub.s32 128, 128
      %367 = vsyncadd [#allocation4], %s366
      %s369 = sshll.u32 [#allocation10], 4
      %s370 = int_to_ptr.vmem [resolvable:$true] %s369
      %372 = dma.vmem_to_hbm [thread:$0]  %s370, 128, %s7, [#allocation4]
    $region49: #{tpu_custom_call.1} parent=1 // pred_fallthru
      _
    // Predicated region
    $region50: #{tpu_custom_call.1} parent=1 // pred_check
      _
    $region51: #{tpu_custom_call.1} parent=1 // pred_check_branch
      %374 = sbr.rel (0) target = $region53
    $region52: #{tpu_custom_call.1} parent=1 // pred_region
      %375 = dma.done [#allocation4], 128
    $region53: #{tpu_custom_call.1} parent=1 // pred_fallthru
      _
    %376 = vsyncpa [#allocation3], 1
    %377 = vsyncpa [#allocation6], 1
    %378 = vsyncpa [#allocation9], 1
    %379 = vsyncpa [#allocation4], 1

</llo_original>
